<compile_context>
chip_gen: v5e
topology: v5e:2x2
jax: 0.10.0
libtpu: 0.0.40
codegen_flags: <defaults>
</compile_context>

<pallas_src>
import functools

import jax
import jax.numpy as jnp
from jax.experimental import pallas as pl
from jax.experimental.pallas import tpu as pltpu


def _layernorm_kernel(x_ref, w_ref, b_ref, o_ref, *, eps):
    # x_ref / o_ref: (Bt, C, T) block; w_ref / b_ref: (1, C, 1) resident params.
    x = x_ref[...].astype(jnp.float32)                # (Bt, C, T)

    # Two-pass stats over the channel axis (matches PyTorch math exactly).
    u = jnp.mean(x, axis=1, keepdims=True)            # (Bt, 1, T)
    xc = x - u
    s = jnp.mean(xc * xc, axis=1, keepdims=True)      # (Bt, 1, T)
    inv = jax.lax.rsqrt(s + eps)                      # EUP rsqrt (free slot)

    w = w_ref[...].astype(jnp.float32)                # (1, C, 1) -> broadcast
    b = b_ref[...].astype(jnp.float32)
    o_ref[...] = (w * (xc * inv) + b).astype(o_ref.dtype)


def _vmem_capacity_bytes():
    """Physical VMEM per TensorCore; conservative fallback if query fails."""
    try:
        return int(pltpu.get_tpu_info().vmem_capacity_bytes)
    except Exception:
        return 64 * 1024 * 1024   # smallest of v5e/v6e/v7x (v7x per-TC)


def _round_up(x, m):
    return ((x + m - 1) // m) * m


def _pick_spatial_tile(hw, c, dtype_bytes, max_block_bytes):
    """Lane-dense spatial tile: multiple of 128, sized to a VMEM byte budget.

    cdiv-tiling is used at the call site, so the tile does not have to divide
    (or even be <=) HW; partial last blocks get masked stores.
    """
    if hw < 128:
        # Full extent is always a legal block dim; tiny maps are handled by
        # batch blocking instead of spatial tiling.
        return hw
    cap = max(128, ((max_block_bytes // (c * dtype_bytes)) // 128) * 128)
    return min(_round_up(hw, 128), cap)


def _pick_batch_block(b, n_spatial, row_bytes, max_block_bytes):
    """Largest divisor of B whose block fits the VMEM budget while keeping
    enough grid steps (>=4 when possible) for megacore sharding on v7x."""
    target_steps = min(4, b * n_spatial)
    best = 1
    for bt in range(1, b + 1):
        if b % bt:
            continue
        if bt * row_bytes > max_block_bytes:
            break
        if (b // bt) * n_spatial < target_steps:
            continue
        best = bt
    return best


def layer_norm_channel(x, weight, bias, eps=1e-6):
    """LayerNorm over axis=1 of an NCHW tensor (matches the PyTorch module).

    x:      (B, C, H, W)
    weight: (1, C, 1, 1)
    bias:   (1, C, 1, 1)
    """
    B, C, H, W = x.shape
    assert weight.shape == (1, C, 1, 1) and bias.shape == (1, C, 1, 1)

    HW = H * W
    x2 = x.reshape(B, C, HW)              # lane-dense spatial axis
    w2 = weight.reshape(1, C, 1)
    b2 = bias.reshape(1, C, 1)

    dtype_bytes = jnp.dtype(x.dtype).itemsize
    vmem_cap = _vmem_capacity_bytes()
    # One block (input or output) gets ~1/16 of physical VMEM; with input +
    # output each double-buffered that is ~1/4 of VMEM for the pipeline.
    max_block_bytes = vmem_cap // 16

    tile = _pick_spatial_tile(HW, C, dtype_bytes, max_block_bytes)
    n_spatial = pl.cdiv(HW, tile)
    row_bytes = C * tile * dtype_bytes
    bt = _pick_batch_block(B, n_spatial, row_bytes, max_block_bytes)

    block_bytes = bt * row_bytes
    param_bytes = 2 * C * dtype_bytes
    # in + out blocks, double-buffered, plus params and slack.
    needed = 4 * block_bytes + 4 * param_bytes + (1 << 20)
    vmem_limit = int(min(max(needed, 32 * 1024 * 1024), vmem_cap - (8 << 20)))

    kernel = functools.partial(_layernorm_kernel, eps=eps)

    out = pl.pallas_call(
        kernel,
        out_shape=jax.ShapeDtypeStruct((B, C, HW), x.dtype),
        grid=(B // bt, n_spatial),
        in_specs=[
            pl.BlockSpec((bt, C, tile), lambda i, s: (i, 0, s)),
            pl.BlockSpec((1, C, 1), lambda i, s: (0, 0, 0)),
            pl.BlockSpec((1, C, 1), lambda i, s: (0, 0, 0)),
        ],
        out_specs=pl.BlockSpec((bt, C, tile), lambda i, s: (i, 0, s)),
        compiler_params=pltpu.CompilerParams(
            dimension_semantics=("parallel", "parallel"),
            vmem_limit_bytes=vmem_limit,
        ),
    )(x2, w2, b2)

    return out.reshape(B, C, H, W)


def _reference(x, weight, bias, eps=1e-6):
    u = jnp.mean(x, axis=1, keepdims=True)
    s = jnp.mean((x - u) ** 2, axis=1, keepdims=True)
    return weight * ((x - u) / jnp.sqrt(s + eps)) + bias


if __name__ == "__main__":
    key = jax.random.PRNGKey(0)
    k0, k1, k2 = jax.random.split(key, 3)

    # Primary case: module default C=7, small feature map (HW = 256 lanes).
    B, C, H, W = 2, 7, 16, 16
    x = jax.random.normal(k0, (B, C, H, W), dtype=jnp.float32)
    weight = jnp.ones((1, C, 1, 1), dtype=jnp.float32)
    bias = jnp.zeros((1, C, 1, 1), dtype=jnp.float32)
    out = jax.block_until_ready(layer_norm_channel(x, weight, bias))
    ref = _reference(x, weight, bias)
    assert jnp.allclose(out, ref, atol=1e-5, rtol=1e-5), "mismatch (256-lane case)"

    # Padded / masked-store case: HW = 130 is not a multiple of 128.
    B2, C2, H2, W2 = 3, 5, 10, 13
    x2 = jax.random.normal(k1, (B2, C2, H2, W2), dtype=jnp.float32)
    w2 = 1.0 + 0.1 * jax.random.normal(k2, (1, C2, 1, 1), dtype=jnp.float32)
    b2 = jnp.full((1, C2, 1, 1), 0.25, dtype=jnp.float32)
    out2 = jax.block_until_ready(layer_norm_channel(x2, w2, b2))
    ref2 = _reference(x2, w2, b2)
    assert jnp.allclose(out2, ref2, atol=1e-5, rtol=1e-5), "mismatch (padded case)"

    # Tiny spatial extent (HW < 128) with batch blocking (Bt > 1).
    B3, C3, H3, W3 = 16, 7, 4, 4
    x3 = jax.random.normal(k2, (B3, C3, H3, W3), dtype=jnp.float32)
    w3 = jnp.ones((1, C3, 1, 1), dtype=jnp.float32)
    b3 = jnp.zeros((1, C3, 1, 1), dtype=jnp.float32)
    out3 = jax.block_until_ready(layer_norm_channel(x3, w3, b3))
    ref3 = _reference(x3, w3, b3)
    assert jnp.allclose(out3, ref3, atol=1e-5, rtol=1e-5), "mismatch (tiny-HW case)"

    print("KERNEL_OK")
</pallas_src>

<mosaic_0001>
module attributes {stable_mosaic.version = 11 : i64} {
  func.func @_layernorm_kernel(%arg0: i32, %arg1: i32, %arg2: memref<1x7x256xf32, #tpu.memory_space<vmem>>, %arg3: memref<1x7x1xf32, #tpu.memory_space<vmem>>, %arg4: memref<1x7x1xf32, #tpu.memory_space<vmem>>, %arg5: memref<1x7x256xf32, #tpu.memory_space<vmem>>) attributes {dimension_semantics = [#tpu.dimension_semantics<parallel>, #tpu.dimension_semantics<parallel>], iteration_bounds = array<i64: 2, 1>, scalar_prefetch = 0 : i64, scratch_operands = 0 : i64, tpu.core_type = #tpu.core_type<tc>, window_params = [{transform_indices = @transform_0, window_bounds = array<i64: 1, 7, 256>}, {pipeline_mode = #tpu.pipeline_mode<synchronous>, transform_indices = @transform_1, window_bounds = array<i64: 1, 7, 1>}, {pipeline_mode = #tpu.pipeline_mode<synchronous>, transform_indices = @transform_2, window_bounds = array<i64: 1, 7, 1>}, {transform_indices = @transform_3, window_bounds = array<i64: 1, 7, 256>}]} {
    %c0 = arith.constant 0 : index
    %c0_0 = arith.constant 0 : index
    %c0_1 = arith.constant 0 : index
    %0 = vector.load %arg2[%c0, %c0_0, %c0_1] : memref<1x7x256xf32, #tpu.memory_space<vmem>>, vector<1x7x256xf32>
    %cst = arith.constant dense<0.000000e+00> : vector<1x256xf32>
    %1 = vector.multi_reduction <add>, %0, %cst [1] : vector<1x7x256xf32> to vector<1x256xf32>
    %2 = vector.shape_cast %1 : vector<1x256xf32> to vector<1x1x256xf32>
    %cst_2 = arith.constant 7.000000e+00 : f32
    %3 = vector.broadcast %cst_2 : f32 to vector<1x1x256xf32>
    %4 = arith.divf %2, %3 : vector<1x1x256xf32>
    %5 = vector.broadcast %4 : vector<1x1x256xf32> to vector<1x7x256xf32>
    %6 = arith.subf %0, %5 : vector<1x7x256xf32>
    %7 = arith.mulf %6, %6 : vector<1x7x256xf32>
    %cst_3 = arith.constant dense<0.000000e+00> : vector<1x256xf32>
    %8 = vector.multi_reduction <add>, %7, %cst_3 [1] : vector<1x7x256xf32> to vector<1x256xf32>
    %9 = vector.shape_cast %8 : vector<1x256xf32> to vector<1x1x256xf32>
    %cst_4 = arith.constant 7.000000e+00 : f32
    %10 = vector.broadcast %cst_4 : f32 to vector<1x1x256xf32>
    %11 = arith.divf %9, %10 : vector<1x1x256xf32>
    %cst_5 = arith.constant 9.99999997E-7 : f32
    %12 = vector.broadcast %cst_5 : f32 to vector<1x1x256xf32>
    %13 = arith.addf %11, %12 : vector<1x1x256xf32>
    %14 = math.rsqrt %13 : vector<1x1x256xf32>
    %c0_6 = arith.constant 0 : index
    %c0_7 = arith.constant 0 : index
    %c0_8 = arith.constant 0 : index
    %15 = vector.load %arg3[%c0_6, %c0_7, %c0_8] : memref<1x7x1xf32, #tpu.memory_space<vmem>>, vector<1x7x1xf32>
    %c0_9 = arith.constant 0 : index
    %c0_10 = arith.constant 0 : index
    %c0_11 = arith.constant 0 : index
    %16 = vector.load %arg4[%c0_9, %c0_10, %c0_11] : memref<1x7x1xf32, #tpu.memory_space<vmem>>, vector<1x7x1xf32>
    %17 = vector.broadcast %14 : vector<1x1x256xf32> to vector<1x7x256xf32>
    %18 = arith.mulf %6, %17 : vector<1x7x256xf32>
    %19 = vector.broadcast %15 : vector<1x7x1xf32> to vector<1x7x256xf32>
    %20 = arith.mulf %19, %18 : vector<1x7x256xf32>
    %21 = vector.broadcast %16 : vector<1x7x1xf32> to vector<1x7x256xf32>
    %22 = arith.addf %20, %21 : vector<1x7x256xf32>
    %c0_12 = arith.constant 0 : index
    %c0_13 = arith.constant 0 : index
    %c0_14 = arith.constant 0 : index
    %23 = vector.load %arg5[%c0_12, %c0_13, %c0_14] : memref<1x7x256xf32, #tpu.memory_space<vmem>>, vector<1x7x256xf32>
    tpu.vector_store %arg5[%c0_12, %c0_13, %c0_14], %22 {strides = array<i32>} : memref<1x7x256xf32, #tpu.memory_space<vmem>>, vector<1x7x256xf32>,
    return
  }
  func.func @transform_0(%arg0: i32, %arg1: i32) -> (i32, i32, i32) {
    %c0_i32 = arith.constant 0 : i32
    %c0_i32_0 = arith.constant 0 : i32
    return %arg0, %c0_i32, %arg1 : i32, i32, i32
  }
  func.func @transform_1(%arg0: i32, %arg1: i32) -> (i32, i32, i32) {
    %c0_i32 = arith.constant 0 : i32
    %c0_i32_0 = arith.constant 0 : i32
    %c0_i32_1 = arith.constant 0 : i32
    %c0_i32_2 = arith.constant 0 : i32
    return %c0_i32, %c0_i32_0, %c0_i32_1 : i32, i32, i32
  }
  func.func @transform_2(%arg0: i32, %arg1: i32) -> (i32, i32, i32) {
    %c0_i32 = arith.constant 0 : i32
    %c0_i32_0 = arith.constant 0 : i32
    %c0_i32_1 = arith.constant 0 : i32
    %c0_i32_2 = arith.constant 0 : i32
    return %c0_i32, %c0_i32_0, %c0_i32_1 : i32, i32, i32
  }
  func.func @transform_3(%arg0: i32, %arg1: i32) -> (i32, i32, i32) {
    %c0_i32 = arith.constant 0 : i32
    %c0_i32_0 = arith.constant 0 : i32
    return %arg0, %c0_i32, %arg1 : i32, i32, i32
  }
}

</mosaic_0001>

<llo_original>
// kernel: tpu_custom_call.1
$region0: #{tpu_custom_call.1}
  #allocation0 [shape = 'u32[]', space=smem, size = 0x4, offset = 0x4, fixed_abs, tag = 'smem constant byte address 0x4 - core index']
  #allocation1 [shape = 'u32[72,128]{1,0:T(1,128)}', space=vmem, size = 0x9000, scoped, tag = 'internal scratch']
  %s0 = inlined_call_operand.vmem [shape: f32[2,7,256], index: 0, kind: input, shape index: {}]
  %s1 = inlined_call_operand.vmem [shape: f32[1,7,1], index: 1, kind: input, shape index: {}]
  %s2 = inlined_call_operand.vmem [shape: f32[1,7,1], index: 2, kind: input, shape index: {}]
  %s3 = inlined_call_operand.vmem [shape: f32[2,7,256], index: 3, kind: output, shape index: {}]
  %s4 = sld [smem:[#allocation0]]
  $region45: #{tpu_custom_call.1} parent=0
    _
  %s6 = ssub.s32 1, %s4
  %s7 = scalar_select 0, %s6, %s4
  loop: start=0, step=1, limit=4
  $region2: #{tpu_custom_call.1} parent=0 // loop_pre_header
    _
  $region3: #{tpu_custom_call.1} parent=0 // loop_header
    %s9 = sphi 0, %s13
    %p10 = scmp.ge.s32.totalorder %s9, 4
    %s16 = sphi 0, %s28
    %s17 = sphi 0, %s24
    %s18 = sphi 0, %s16
    %s19 = sphi 0, %s17
    %s20 = sphi 0, %s18
    %s21 = sphi 0, %s19
    %s33 = sphi 0, %s35
    %s36 = sphi 0, %s33
    %s37 = sphi 0, %s36
    %s53 = sphi 0, %s37
    %s57 = sphi 0, %s57
    %s59 = sphi 0, %s57
    %s60 = sphi 0, %s59
    %s74 = sphi 0, %s60
    %s78 = sphi 0, %s78
    %s80 = sphi 0, %s78
    %s81 = sphi 0, %s80
    %s95 = sphi 0, %s81
    %s103 = sphi 0, %s105
    %s106 = sphi 0, %s103
    %s107 = sphi 0, %s106
    %s123 = sphi 0, %s107
  $region4: #{tpu_custom_call.1} parent=0 // loop_header_branch
    %12 = sbr.rel (%p10) target = $region8
  $region5: #{tpu_custom_call.1} parent=0 // loop_body
    %s14 = ssub.s32 %s9, 1
    %s15 = ssub.s32 %s9, 2
    %s22 = sadd.s32 1, %s17
    %p23 = scmp.ge.s32.totalorder %s22, 1
    %s24 = scalar_select %p23, 0, %s22
    %s25 = sadd.s32 1, %s16
    %s26 = scalar_select %p23, %s25, %s16
    %p27 = scmp.ge.s32.totalorder %s26, 2
    %s28 = scalar_select %p27, 0, %s26
    %s29 = ssub.s32 %s16, %s28
    %s30 = ssub.s32 %s17, %s24
    %s31 = sor.u32 %s29, %s30
    %p32 = scmp.eq.s32.totalorder %s31, 0
    %s34 = sadd.s32 %s33, 1
    %s35 = scalar_select %p32, %s33, %s34
    %p38 = pneg %p32
    %p39 = scmp.eq.s32.totalorder %s9, 1
    %p40 = por %p38, %p39
    %p41 = scmp.ne.s32.totalorder %s33, %s36
    %p42 = scmp.eq.s32.totalorder %s9, 0
    %p43 = por %p41, %p42
    %p44 = scmp.ne.s32.totalorder %s33, %s36
    %p45 = scmp.eq.s32.totalorder %s14, 1
    %p46 = por %p44, %p45
    %p47 = scmp.ne.s32.totalorder %s36, %s37
    %p48 = scmp.eq.s32.totalorder %s14, 0
    %p49 = por %p47, %p48
    %p50 = scmp.ne.s32.totalorder %s36, %s37
    %p51 = scmp.eq.s32.totalorder %s15, 1
    %p52 = por %p50, %p51
    %p54 = scmp.ne.s32.totalorder %s37, %s53
    %p55 = scmp.eq.s32.totalorder %s15, 0
    %p56 = por %p54, %p55
    %s58 = sadd.s32 %s57, 1
    %p61 = scmp.eq.s32.totalorder %s9, 1
    %p62 = scmp.ne.s32.totalorder %s57, %s59
    %p63 = scmp.eq.s32.totalorder %s9, 0
    %p64 = por %p62, %p63
    %p65 = scmp.ne.s32.totalorder %s57, %s59
    %p66 = scmp.eq.s32.totalorder %s14, 1
    %p67 = por %p65, %p66
    %p68 = scmp.ne.s32.totalorder %s59, %s60
    %p69 = scmp.eq.s32.totalorder %s14, 0
    %p70 = por %p68, %p69
    %p71 = scmp.ne.s32.totalorder %s59, %s60
    %p72 = scmp.eq.s32.totalorder %s15, 1
    %p73 = por %p71, %p72
    %p75 = scmp.ne.s32.totalorder %s60, %s74
    %p76 = scmp.eq.s32.totalorder %s15, 0
    %p77 = por %p75, %p76
    %s79 = sadd.s32 %s78, 1
    %p82 = scmp.eq.s32.totalorder %s9, 1
    %p83 = scmp.ne.s32.totalorder %s78, %s80
    %p84 = scmp.eq.s32.totalorder %s9, 0
    %p85 = por %p83, %p84
    %p86 = scmp.ne.s32.totalorder %s78, %s80
    %p87 = scmp.eq.s32.totalorder %s14, 1
    %p88 = por %p86, %p87
    %p89 = scmp.ne.s32.totalorder %s80, %s81
    %p90 = scmp.eq.s32.totalorder %s14, 0
    %p91 = por %p89, %p90
    %p92 = scmp.ne.s32.totalorder %s80, %s81
    %p93 = scmp.eq.s32.totalorder %s15, 1
    %p94 = por %p92, %p93
    %p96 = scmp.ne.s32.totalorder %s81, %s95
    %p97 = scmp.eq.s32.totalorder %s15, 0
    %p98 = por %p96, %p97
    %s99 = ssub.s32 %s16, %s28
    %s100 = ssub.s32 %s17, %s24
    %s101 = sor.u32 %s99, %s100
    %p102 = scmp.eq.s32.totalorder %s101, 0
    %s104 = sadd.s32 %s103, 1
    %s105 = scalar_select %p102, %s103, %s104
    %p108 = pneg %p102
    %p109 = scmp.eq.s32.totalorder %s9, 1
    %p110 = por %p108, %p109
    %p111 = scmp.ne.s32.totalorder %s103, %s106
    %p112 = scmp.eq.s32.totalorder %s9, 0
    %p113 = por %p111, %p112
    %p114 = scmp.ne.s32.totalorder %s103, %s106
    %p115 = scmp.eq.s32.totalorder %s14, 1
    %p116 = por %p114, %p115
    %p117 = scmp.ne.s32.totalorder %s106, %s107
    %p118 = scmp.eq.s32.totalorder %s14, 0
    %p119 = por %p117, %p118
    %p120 = scmp.ne.s32.totalorder %s106, %s107
    %p121 = scmp.eq.s32.totalorder %s15, 1
    %p122 = por %p120, %p121
    %p124 = scmp.ne.s32.totalorder %s107, %s123
    %p125 = scmp.eq.s32.totalorder %s15, 0
    %p126 = por %p124, %p125
    %p127 = scmp.le.s32.totalorder 1, %s9
    %p128 = scmp.lt.s32.totalorder %s9, 3
    %p129 = pnand %p127, %p128
    %p130 = pneg %p129
    // Predicated region
    $region9: #{tpu_custom_call.1} parent=5 // pred_check
      _
    $region10: #{tpu_custom_call.1} parent=5 // pred_check_branch
      %132 = sbr.rel (%p129) target = $region12
    $region11: #{tpu_custom_call.1} parent=5 // pred_region
      %s133 = ssub.s32 %s9, 1
      // Predicated region
      $region13: #{tpu_custom_call.1} parent=11 // pred_check
        %p134 = pneg %p70
      $region14: #{tpu_custom_call.1} parent=11 // pred_check_branch
        %136 = sbr.rel (%p134) target = $region16
      $region15: #{tpu_custom_call.1} parent=11 // pred_region
        _
      $region16: #{tpu_custom_call.1} parent=11 // pred_fallthru
        _
      // Predicated region
      $region17: #{tpu_custom_call.1} parent=11 // pred_check
        %p137 = pneg %p91
      $region18: #{tpu_custom_call.1} parent=11 // pred_check_branch
        %139 = sbr.rel (%p137) target = $region20
      $region19: #{tpu_custom_call.1} parent=11 // pred_region
        _
      $region20: #{tpu_custom_call.1} parent=11 // pred_fallthru
        _
    $region12: #{tpu_custom_call.1} parent=5 // pred_fallthru
      _
    %p140 = scmp.lt.s32.totalorder %s9, 2
    // Predicated region
    $region21: #{tpu_custom_call.1} parent=5 // pred_check
      %p141 = pneg %p140
    $region22: #{tpu_custom_call.1} parent=5 // pred_check_branch
      %143 = sbr.rel (%p141) target = $region24
    $region23: #{tpu_custom_call.1} parent=5 // pred_region
      // Predicated region
      $region25: #{tpu_custom_call.1} parent=23 // pred_check
        %p144 = pneg %p43
      $region26: #{tpu_custom_call.1} parent=23 // pred_check_branch
        %146 = sbr.rel (%p144) target = $region28
      $region27: #{tpu_custom_call.1} parent=23 // pred_region
        %s147 = smul.u32 2, %s17
        %p148 = scmp.lt.s32.totalorder %s16, 1
        %s149 = scalar_select %p148, %s16, 1
        %p150 = scmp.lt.s32.totalorder %s147, 1
        %s151 = scalar_select %p150, %s147, 1
        %s152 = smul.addr %s149, 2
        %s153 = sadd.s32 %s151, %s152
        %s154 = smul.addr %s153, 8
        %s155 = scalar_lea.vmem %s0, %s154
        %s156 = smul.u32 2, %s17
      $region28: #{tpu_custom_call.1} parent=23 // pred_fallthru
        _
    $region24: #{tpu_custom_call.1} parent=5 // pred_fallthru
      _
    %p157 = scmp.le.s32.totalorder 1, %s9
    %p158 = scmp.lt.s32.totalorder %s9, 3
    %p159 = pnand %p157, %p158
    %p160 = pneg %p159
    // Predicated region
    $region29: #{tpu_custom_call.1} parent=5 // pred_check
      _
    $region30: #{tpu_custom_call.1} parent=5 // pred_check_branch
      %162 = sbr.rel (%p159) target = $region32
    $region31: #{tpu_custom_call.1} parent=5 // pred_region
      %s163 = ssub.s32 %s9, 1
      %s164 = smul.u32 2, %s19
      %p165 = scmp.lt.s32.totalorder %s18, 1
      %s166 = scalar_select %p165, %s18, 1
      %p167 = scmp.lt.s32.totalorder %s164, 1
      %s168 = scalar_select %p167, %s164, 1
      %s169 = smul.addr %s166, 2
      %s170 = sadd.s32 %s168, %s169
      %s171 = smul.addr %s170, 8
      %s172 = scalar_lea.vmem %s0, %s171
      %p173 = pneg %p49
      %p174 = pneg %p46
      %p175 = pneg %p70
      %p176 = pneg %p67
      %p177 = pneg %p91
      %p178 = pneg %p88
      %p179 = pneg %p119
      %p180 = pneg %p116
      %s181 = smul.u32 2, %s19
      %p182 = scmp.lt.s32.totalorder %s18, 1
      %s183 = scalar_select %p182, %s18, 1
      %p184 = scmp.lt.s32.totalorder %s181, 1
      %s185 = scalar_select %p184, %s181, 1
      %s186 = smul.addr %s183, 2
      %s187 = sadd.s32 %s185, %s186
      %s188 = smul.addr %s187, 8
      %s189 = scalar_lea.vmem %s3, %s188
      %s190 = smul.u32 2, %s19
      %p191 = scmp.lt.s32.totalorder %s18, 1
      %s192 = scalar_select %p191, %s18, 1
      %p193 = scmp.lt.s32.totalorder %s190, 1
      %s194 = scalar_select %p193, %s190, 1
      %s195 = smul.addr %s192, 2
      %s196 = sadd.s32 %s194, %s195
      %s197 = smul.addr %s196, 8
      %s198 = scalar_lea.vmem %s0, %s197
      %s199 = smul.u32 2, %s19
      %s200 = smul.u32 2, %s19
      %p201 = scmp.lt.s32.totalorder %s18, 1
      %s202 = scalar_select %p201, %s18, 1
      %p203 = scmp.lt.s32.totalorder %s200, 1
      %s204 = scalar_select %p203, %s200, 1
      %s205 = smul.addr %s202, 2
      %s206 = sadd.s32 %s204, %s205
      %s207 = smul.addr %s206, 8
      %s208 = scalar_lea.vmem %s3, %s207
      %s209 = smul.u32 2, %s19
      %v210 = vld [vmem:[%s198] sm:$0x7f]
      %v211 = vld [vmem:[%s198 + $0x8] sm:$0x7f]
      %vm212 = vcmask 1046528
      %v213 = vsel %vm212, %v210, 0.0
      %v214 = vrot.slane %v213, 4
      %v215 = vadd.f32 %v213, %v214
      %v216 = vrot.slane %v215, 2
      %v217 = vadd.f32 %v215, %v216
      %v218 = vrot.slane %v217, 1
      %v219 = vadd.f32 %v217, %v218
      %v220 = vsel %vm212, %v211, 0.0
      %v221 = vrot.slane %v220, 4
      %v222 = vadd.f32 %v220, %v221
      %v223 = vrot.slane %v222, 2
      %v224 = vadd.f32 %v222, %v223
      %v225 = vrot.slane %v224, 1
      %v226 = vadd.f32 %v224, %v225
      %v227 = vrcp.pop 7.0
      %v228 = vmul.f32 7.0, %v227
      %v229 = vsub.f32 1.0, %v228
      %v230 = vmul.f32 %v227, %v229
      %v231 = vadd.f32 %v227, %v230
      %vm232 = vweird.f32 %v227
      %v233 = vsel %vm232, %v227, %v231
      %v234 = vmul.f32 %v219, %v233
      %v235 = vmul.f32 %v226, %v233
      %v236 = vsub.f32 %v210, %v234
      %v237 = vsub.f32 %v211, %v235
      %v238 = vmul.f32 %v236, %v236
      %v239 = vmul.f32 %v237, %v237
      %v240 = vsel %vm212, %v238, 0.0
      %v241 = vrot.slane %v240, 4
      %v242 = vadd.f32 %v240, %v241
      %v243 = vrot.slane %v242, 2
      %v244 = vadd.f32 %v242, %v243
      %v245 = vrot.slane %v244, 1
      %v246 = vadd.f32 %v244, %v245
      %v247 = vsel %vm212, %v239, 0.0
      %v248 = vrot.slane %v247, 4
      %v249 = vadd.f32 %v247, %v248
      %v250 = vrot.slane %v249, 2
      %v251 = vadd.f32 %v249, %v250
      %v252 = vrot.slane %v251, 1
      %v253 = vadd.f32 %v251, %v252
      %v254 = vmul.f32 %v246, %v233
      %v255 = vmul.f32 %v253, %v233
      %v256 = vadd.f32 %v254, 1e-06
      %v257 = vadd.f32 %v255, 1e-06
      %v258 = vrsqrt.pop %v256
      %v259 = vmul.f32 %v258, %v256
      %v260 = vmul.f32 %v259, %v258
      %v261 = vmul.f32 0.5, %v260
      %v262 = vsub.f32 1.5, %v261
      %v263 = vmul.f32 %v258, %v262
      %vm264 = vweird.f32 %v256
      %vm265 = vweird.f32 %v258
      %vm266 = vmor %vm264, %vm265
      %v267 = vsel %vm266, %v258, %v263
      %v268 = vrsqrt.pop %v257
      %v269 = vmul.f32 %v268, %v257
      %v270 = vmul.f32 %v269, %v268
      %v271 = vmul.f32 0.5, %v270
      %v272 = vsub.f32 1.5, %v271
      %v273 = vmul.f32 %v268, %v272
      %vm274 = vweird.f32 %v257
      %vm275 = vweird.f32 %v268
      %vm276 = vmor %vm274, %vm275
      %v277 = vsel %vm276, %v268, %v273
      %v278 = vld [vmem:[%s1] sm:$0x7f]
      %v279 = vld [vmem:[%s2] sm:$0x7f]
      %v280 = vmul.f32 %v236, %v267
      %v281 = vmul.f32 %v237, %v277
      %283 = vset.pattern.permute.xlu0 0
      %284 = vperm.xlu0 %283, %v278
      %v285 = vpop.permute.xlu0 %284
      %v287 = vmul.f32 %v285, %v280
      %v288 = vmul.f32 %v285, %v281
      %290 = vset.pattern.permute.xlu0 0
      %291 = vperm.xlu0 %290, %v279
      %v292 = vpop.permute.xlu0 %291
      %v294 = vadd.f32 %v287, %v292
      %v295 = vadd.f32 %v288, %v292
      %296 = vst [vmem:[%s208] sm:$0x7f] %v294
      %297 = vst [vmem:[%s208 + $0x8] sm:$0x7f] %v295
      %s298 = smul.u32 2, %s19
      %p299 = scmp.lt.s32.totalorder %s18, 1
      %s300 = scalar_select %p299, %s18, 1
      %p301 = scmp.lt.s32.totalorder %s298, 1
      %s302 = scalar_select %p301, %s298, 1
      %s303 = smul.addr %s300, 2
      %s304 = sadd.s32 %s302, %s303
      %s305 = smul.addr %s304, 8
      %s306 = scalar_lea.vmem %s3, %s305
      // Predicated region
      $region33: #{tpu_custom_call.1} parent=31 // pred_check
        %p307 = pneg %p116
      $region34: #{tpu_custom_call.1} parent=31 // pred_check_branch
        %309 = sbr.rel (%p307) target = $region36
      $region35: #{tpu_custom_call.1} parent=31 // pred_region
        %s310 = smul.u32 2, %s19
      $region36: #{tpu_custom_call.1} parent=31 // pred_fallthru
        _
    $region32: #{tpu_custom_call.1} parent=5 // pred_fallthru
      _
    %p311 = scmp.le.s32.totalorder 2, %s9
    // Predicated region
    $region37: #{tpu_custom_call.1} parent=5 // pred_check
      %p312 = pneg %p311
    $region38: #{tpu_custom_call.1} parent=5 // pred_check_branch
      %314 = sbr.rel (%p312) target = $region40
    $region39: #{tpu_custom_call.1} parent=5 // pred_region
      %s315 = ssub.s32 %s9, 2
      // Predicated region
      $region41: #{tpu_custom_call.1} parent=39 // pred_check
        %p316 = pneg %p122
      $region42: #{tpu_custom_call.1} parent=39 // pred_check_branch
        %318 = sbr.rel (%p316) target = $region44
      $region43: #{tpu_custom_call.1} parent=39 // pred_region
        %s319 = smul.u32 2, %s21
        %p320 = scmp.lt.s32.totalorder %s20, 1
        %s321 = scalar_select %p320, %s20, 1
        %p322 = scmp.lt.s32.totalorder %s319, 1
        %s323 = scalar_select %p322, %s319, 1
        %s324 = smul.addr %s321, 2
        %s325 = sadd.s32 %s323, %s324
        %s326 = smul.addr %s325, 8
        %s327 = scalar_lea.vmem %s3, %s326
      $region44: #{tpu_custom_call.1} parent=39 // pred_fallthru
        _
    $region40: #{tpu_custom_call.1} parent=5 // pred_fallthru
      _
  $region6: #{tpu_custom_call.1} parent=0 // loop_footer
    %s13 = sadd.s32 1, %s9
  $region7: #{tpu_custom_call.1} parent=0 // loop_footer_branch
    %8 = sbr.rel target = $region3
  $region8: #{tpu_custom_call.1} parent=0 // loop_exit
    _

</llo_original>
